<compile_context>
chip_gen: v7x
topology: tpu7x:2x2x1
jax: 0.10.0
libtpu: 0.0.40
codegen_flags: <defaults>
</compile_context>

<pallas_src>
import functools

import jax
import jax.numpy as jnp
from jax.experimental import pallas as pl
from jax.experimental.pallas import tpu as pltpu

_INV_SQRT2 = 0.7071067811865476


def projection_head_kernel(x_ref, w1_ref, b1_ref, w2_ref, b2_ref,
                           gamma_ref, beta_ref, o_ref):
    # projected = x @ W1 + b1   (nn.Linear(embedding_dim, projection_dim))
    # bf16 operands, f32 accumulation on the MXU.
    x_bf = x_ref[...].astype(jnp.bfloat16)
    projected = jnp.dot(x_bf, w1_ref[...],
                        preferred_element_type=jnp.float32) + b1_ref[...]

    # GELU (exact, erf-based — matches torch.nn.GELU() default numerics).
    h = 0.5 * projected * (1.0 + jax.lax.erf(projected * _INV_SQRT2))

    # fc: h @ W2 + b2           (nn.Linear(projection_dim, projection_dim))
    y = jnp.dot(h.astype(jnp.bfloat16), w2_ref[...],
                preferred_element_type=jnp.float32) + b2_ref[...]

    # TODO(synk): nn.Dropout is identity in eval/inference mode; a training path would
    # need pltpu.prng_seed / pltpu.prng_random_bits masking.

    # residual (f32)
    y = y + projected

    # LayerNorm over the last dim (eps = 1e-5, elementwise affine), one-pass stats:
    # mean = sum(y)/P, var = sum(y^2)/P - mean^2  (independent cross-lane reductions).
    inv_p = 1.0 / y.shape[-1]
    s1 = jnp.sum(y, axis=-1, keepdims=True)
    s2 = jnp.sum(y * y, axis=-1, keepdims=True)
    mean = s1 * inv_p
    var = s2 * inv_p - mean * mean
    inv_std = jax.lax.rsqrt(var + 1e-5)
    o_ref[...] = ((y - mean) * inv_std * gamma_ref[...] + beta_ref[...]).astype(o_ref.dtype)


@functools.partial(jax.jit, static_argnames=("block_b",))
def projection_head(x, w1, b1, w2, b2, gamma, beta, *, block_b=512):
    B, E = x.shape
    P = w1.shape[1]

    # Halve weight residency / DMA traffic: weights live in VMEM as bf16 for the whole call.
    w1 = w1.astype(jnp.bfloat16)
    w2 = w2.astype(jnp.bfloat16)

    # Batch tile: full B for small batches (full-dim exception to the (8,128) rule),
    # otherwise a multiple-of-8 tile big enough to amortize per-step grid overhead
    # and to feed the 256-row MXU on v6e/v7x.
    TB = B if B <= block_b else block_b
    grid = (pl.cdiv(B, TB),)

    x_spec = pl.BlockSpec((TB, E), lambda i: (i, 0))
    out_spec = pl.BlockSpec((TB, P), lambda i: (i, 0))
    # Parameters: same block every grid step -> stay resident in VMEM (DMA'd once).
    resident = lambda shape: pl.BlockSpec(shape, lambda i: (0, 0))

    # Explicit VMEM budget: bf16 weights + f32 vectors resident, double-buffered
    # x/out f32 tiles, plus intermediate headroom. Clamp to the smallest physical
    # VMEM across targets (v7x: 64 MiB).
    resident_bytes = (E * P + P * P) * 2 + 4 * P * 4
    io_bytes = 2 * TB * E * 4 + 2 * TB * P * 4
    scratch_bytes = 3 * TB * P * 4 + TB * E * 2 + TB * P * 2
    vmem_limit = int(1.5 * (resident_bytes + io_bytes + scratch_bytes)) + (4 << 20)
    vmem_limit = min(max(vmem_limit, 32 << 20), 64 << 20)

    return pl.pallas_call(
        projection_head_kernel,
        out_shape=jax.ShapeDtypeStruct((B, P), x.dtype),
        grid=grid,
        in_specs=[
            x_spec,             # x            [TB, E]
            resident((E, P)),   # w1 (bf16)
            resident((1, P)),   # b1
            resident((P, P)),   # w2 (bf16)
            resident((1, P)),   # b2
            resident((1, P)),   # gamma
            resident((1, P)),   # beta
        ],
        out_specs=out_spec,
        compiler_params=pltpu.CompilerParams(
            dimension_semantics=("parallel",),
            vmem_limit_bytes=vmem_limit,
        ),
    )(x, w1, b1, w2, b2, gamma, beta)


def reference(x, w1, b1, w2, b2, gamma, beta, *, bf16_matmul=False):
    if bf16_matmul:
        projected = jnp.dot(x.astype(jnp.bfloat16), w1.astype(jnp.bfloat16),
                            preferred_element_type=jnp.float32) + b1
    else:
        projected = x @ w1 + b1
    h = jax.nn.gelu(projected, approximate=False)
    if bf16_matmul:
        y = jnp.dot(h.astype(jnp.bfloat16), w2.astype(jnp.bfloat16),
                    preferred_element_type=jnp.float32) + b2
    else:
        y = h @ w2 + b2
    y = y + projected
    mean = jnp.mean(y, axis=-1, keepdims=True)
    var = jnp.var(y, axis=-1, keepdims=True)
    return (y - mean) / jnp.sqrt(var + 1e-5) * gamma + beta


def _make_params(key, B, E, P):
    k_x, k_w1, k_b1, k_w2, k_b2 = jax.random.split(key, 5)
    x = jax.random.normal(k_x, (B, E), dtype=jnp.float32)
    bound1 = 1.0 / jnp.sqrt(E)
    w1 = jax.random.uniform(k_w1, (E, P), minval=-bound1, maxval=bound1, dtype=jnp.float32)
    b1 = jax.random.uniform(k_b1, (1, P), minval=-bound1, maxval=bound1, dtype=jnp.float32)
    bound2 = 1.0 / jnp.sqrt(P)
    w2 = jax.random.uniform(k_w2, (P, P), minval=-bound2, maxval=bound2, dtype=jnp.float32)
    b2 = jax.random.uniform(k_b2, (1, P), minval=-bound2, maxval=bound2, dtype=jnp.float32)
    gamma = jnp.ones((1, P), dtype=jnp.float32)   # LayerNorm weight
    beta = jnp.zeros((1, P), dtype=jnp.float32)   # LayerNorm bias
    return x, w1, b1, w2, b2, gamma, beta


if __name__ == "__main__":
    key = jax.random.PRNGKey(0)

    # --- small single-block case (B <= TB) ---
    B, E, P = 8, 32, 128   # batch, embedding_dim, cfg.projection_dim
    x, w1, b1, w2, b2, gamma, beta = _make_params(key, B, E, P)

    out = projection_head(x, w1, b1, w2, b2, gamma, beta)
    jax.block_until_ready(out)
    assert out.shape == (B, P)

    # exact-path check (bf16-operand matmuls, f32 accumulation)
    ref_bf = reference(x, w1, b1, w2, b2, gamma, beta, bf16_matmul=True)
    assert jnp.allclose(out, ref_bf, atol=2e-3, rtol=2e-3), "mismatch vs bf16-matmul reference"
    # sanity check vs full-f32 reference (bf16 operands lose mantissa -> looser tol)
    ref_f32 = reference(x, w1, b1, w2, b2, gamma, beta)
    assert jnp.allclose(out, ref_f32, atol=5e-2, rtol=5e-2), "mismatch vs f32 reference"

    # --- multi-step grid case (exercises batch tiling + resident weights) ---
    B2 = 64
    x2, w1b, b1b, w2b, b2b, g2, be2 = _make_params(jax.random.PRNGKey(1), B2, E, P)
    out2 = projection_head(x2, w1b, b1b, w2b, b2b, g2, be2, block_b=16)  # grid = (4,)
    jax.block_until_ready(out2)
    ref2 = reference(x2, w1b, b1b, w2b, b2b, g2, be2, bf16_matmul=True)
    assert out2.shape == (B2, P)
    assert jnp.allclose(out2, ref2, atol=2e-3, rtol=2e-3), "mismatch on multi-block grid"

    print("KERNEL_OK")
</pallas_src>

<mosaic_0001>
module attributes {stable_mosaic.version = 11 : i64} {
  func.func @projection_head_kernel(%arg0: i32, %arg1: memref<8x32xf32, #tpu.memory_space<vmem>>, %arg2: memref<32x128xbf16, #tpu.memory_space<vmem>>, %arg3: memref<1x128xf32, #tpu.memory_space<vmem>>, %arg4: memref<128x128xbf16, #tpu.memory_space<vmem>>, %arg5: memref<1x128xf32, #tpu.memory_space<vmem>>, %arg6: memref<1x128xf32, #tpu.memory_space<vmem>>, %arg7: memref<1x128xf32, #tpu.memory_space<vmem>>, %arg8: memref<8x128xf32, #tpu.memory_space<vmem>>) attributes {dimension_semantics = [#tpu.dimension_semantics<parallel>], iteration_bounds = array<i64: 1>, scalar_prefetch = 0 : i64, scratch_operands = 0 : i64, tpu.core_type = #tpu.core_type<tc>, window_params = [{transform_indices = @transform_0, window_bounds = array<i64: 8, 32>}, {pipeline_mode = #tpu.pipeline_mode<synchronous>, transform_indices = @transform_1, window_bounds = array<i64: 32, 128>}, {pipeline_mode = #tpu.pipeline_mode<synchronous>, transform_indices = @transform_2, window_bounds = array<i64: 1, 128>}, {pipeline_mode = #tpu.pipeline_mode<synchronous>, transform_indices = @transform_3, window_bounds = array<i64: 128, 128>}, {pipeline_mode = #tpu.pipeline_mode<synchronous>, transform_indices = @transform_4, window_bounds = array<i64: 1, 128>}, {pipeline_mode = #tpu.pipeline_mode<synchronous>, transform_indices = @transform_5, window_bounds = array<i64: 1, 128>}, {pipeline_mode = #tpu.pipeline_mode<synchronous>, transform_indices = @transform_6, window_bounds = array<i64: 1, 128>}, {transform_indices = @transform_7, window_bounds = array<i64: 8, 128>}]} {
    %c0 = arith.constant 0 : index
    %c0_0 = arith.constant 0 : index
    %0 = vector.load %arg1[%c0, %c0_0] : memref<8x32xf32, #tpu.memory_space<vmem>>, vector<8x32xf32>
    %1 = arith.truncf %0 : vector<8x32xf32> to vector<8x32xbf16>
    %c0_1 = arith.constant 0 : index
    %c0_2 = arith.constant 0 : index
    %2 = vector.load %arg2[%c0_1, %c0_2] : memref<32x128xbf16, #tpu.memory_space<vmem>>, vector<32x128xbf16>
    %cst = arith.constant dense<0.000000e+00> : vector<8x128xf32>
    %3 = tpu.matmul %1, %2, %cst {dimension_numbers = #tpu.dot_dimension_numbers<[1], [0], [0], [1], [0, 0, 1, 1], [], []>} : vector<8x32xbf16>, vector<32x128xbf16>, vector<8x128xf32> -> vector<8x128xf32>
    %c0_3 = arith.constant 0 : index
    %c0_4 = arith.constant 0 : index
    %4 = vector.load %arg3[%c0_3, %c0_4] : memref<1x128xf32, #tpu.memory_space<vmem>>, vector<1x128xf32>
    %5 = vector.broadcast %4 : vector<1x128xf32> to vector<8x128xf32>
    %6 = arith.addf %3, %5 : vector<8x128xf32>
    %cst_5 = arith.constant 5.000000e-01 : f32
    %7 = vector.broadcast %cst_5 : f32 to vector<8x128xf32>
    %8 = arith.mulf %7, %6 : vector<8x128xf32>
    %cst_6 = arith.constant 0.707106769 : f32
    %9 = vector.broadcast %cst_6 : f32 to vector<8x128xf32>
    %10 = arith.mulf %6, %9 : vector<8x128xf32>
    %11 = math.erf %10 : vector<8x128xf32>
    %cst_7 = arith.constant 1.000000e+00 : f32
    %12 = vector.broadcast %cst_7 : f32 to vector<8x128xf32>
    %13 = arith.addf %12, %11 : vector<8x128xf32>
    %14 = arith.mulf %8, %13 : vector<8x128xf32>
    %15 = arith.truncf %14 : vector<8x128xf32> to vector<8x128xbf16>
    %c0_8 = arith.constant 0 : index
    %c0_9 = arith.constant 0 : index
    %16 = vector.load %arg4[%c0_8, %c0_9] : memref<128x128xbf16, #tpu.memory_space<vmem>>, vector<128x128xbf16>
    %cst_10 = arith.constant dense<0.000000e+00> : vector<8x128xf32>
    %17 = tpu.matmul %15, %16, %cst_10 {dimension_numbers = #tpu.dot_dimension_numbers<[1], [0], [0], [1], [0, 0, 1, 1], [], []>} : vector<8x128xbf16>, vector<128x128xbf16>, vector<8x128xf32> -> vector<8x128xf32>
    %c0_11 = arith.constant 0 : index
    %c0_12 = arith.constant 0 : index
    %18 = vector.load %arg5[%c0_11, %c0_12] : memref<1x128xf32, #tpu.memory_space<vmem>>, vector<1x128xf32>
    %19 = vector.broadcast %18 : vector<1x128xf32> to vector<8x128xf32>
    %20 = arith.addf %17, %19 : vector<8x128xf32>
    %21 = arith.addf %20, %6 : vector<8x128xf32>
    %cst_13 = arith.constant dense<0.000000e+00> : vector<8xf32>
    %22 = vector.multi_reduction <add>, %21, %cst_13 [1] : vector<8x128xf32> to vector<8xf32>
    %23 = vector.shape_cast %22 : vector<8xf32> to vector<8x1xf32>
    %24 = arith.mulf %21, %21 : vector<8x128xf32>
    %cst_14 = arith.constant dense<0.000000e+00> : vector<8xf32>
    %25 = vector.multi_reduction <add>, %24, %cst_14 [1] : vector<8x128xf32> to vector<8xf32>
    %26 = vector.shape_cast %25 : vector<8xf32> to vector<8x1xf32>
    %cst_15 = arith.constant 7.812500e-03 : f32
    %27 = vector.broadcast %cst_15 : f32 to vector<8x1xf32>
    %28 = arith.mulf %23, %27 : vector<8x1xf32>
    %cst_16 = arith.constant 7.812500e-03 : f32
    %29 = vector.broadcast %cst_16 : f32 to vector<8x1xf32>
    %30 = arith.mulf %26, %29 : vector<8x1xf32>
    %31 = arith.mulf %28, %28 : vector<8x1xf32>
    %32 = arith.subf %30, %31 : vector<8x1xf32>
    %cst_17 = arith.constant 9.99999974E-6 : f32
    %33 = vector.broadcast %cst_17 : f32 to vector<8x1xf32>
    %34 = arith.addf %32, %33 : vector<8x1xf32>
    %35 = math.rsqrt %34 : vector<8x1xf32>
    %36 = vector.broadcast %28 : vector<8x1xf32> to vector<8x128xf32>
    %37 = arith.subf %21, %36 : vector<8x128xf32>
    %38 = vector.broadcast %35 : vector<8x1xf32> to vector<8x128xf32>
    %39 = arith.mulf %37, %38 : vector<8x128xf32>
    %c0_18 = arith.constant 0 : index
    %c0_19 = arith.constant 0 : index
    %40 = vector.load %arg6[%c0_18, %c0_19] : memref<1x128xf32, #tpu.memory_space<vmem>>, vector<1x128xf32>
    %41 = vector.broadcast %40 : vector<1x128xf32> to vector<8x128xf32>
    %42 = arith.mulf %39, %41 : vector<8x128xf32>
    %c0_20 = arith.constant 0 : index
    %c0_21 = arith.constant 0 : index
    %43 = vector.load %arg7[%c0_20, %c0_21] : memref<1x128xf32, #tpu.memory_space<vmem>>, vector<1x128xf32>
    %44 = vector.broadcast %43 : vector<1x128xf32> to vector<8x128xf32>
    %45 = arith.addf %42, %44 : vector<8x128xf32>
    %c0_22 = arith.constant 0 : index
    %c0_23 = arith.constant 0 : index
    %46 = vector.load %arg8[%c0_22, %c0_23] : memref<8x128xf32, #tpu.memory_space<vmem>>, vector<8x128xf32>
    tpu.vector_store %arg8[%c0_22, %c0_23], %45 {strides = array<i32>} : memref<8x128xf32, #tpu.memory_space<vmem>>, vector<8x128xf32>,
    return
  }
  func.func @transform_0(%arg0: i32) -> (i32, i32) {
    %c0_i32 = arith.constant 0 : i32
    %c0_i32_0 = arith.constant 0 : i32
    return %arg0, %c0_i32 : i32, i32
  }
  func.func @transform_1(%arg0: i32) -> (i32, i32) {
    %c0_i32 = arith.constant 0 : i32
    %c0_i32_0 = arith.constant 0 : i32
    %c0_i32_1 = arith.constant 0 : i32
    return %c0_i32, %c0_i32_0 : i32, i32
  }
  func.func @transform_2(%arg0: i32) -> (i32, i32) {
    %c0_i32 = arith.constant 0 : i32
    %c0_i32_0 = arith.constant 0 : i32
    %c0_i32_1 = arith.constant 0 : i32
    return %c0_i32, %c0_i32_0 : i32, i32
  }
  func.func @transform_3(%arg0: i32) -> (i32, i32) {
    %c0_i32 = arith.constant 0 : i32
    %c0_i32_0 = arith.constant 0 : i32
    %c0_i32_1 = arith.constant 0 : i32
    return %c0_i32, %c0_i32_0 : i32, i32
  }
  func.func @transform_4(%arg0: i32) -> (i32, i32) {
    %c0_i32 = arith.constant 0 : i32
    %c0_i32_0 = arith.constant 0 : i32
    %c0_i32_1 = arith.constant 0 : i32
    return %c0_i32, %c0_i32_0 : i32, i32
  }
  func.func @transform_5(%arg0: i32) -> (i32, i32) {
    %c0_i32 = arith.constant 0 : i32
    %c0_i32_0 = arith.constant 0 : i32
    %c0_i32_1 = arith.constant 0 : i32
    return %c0_i32, %c0_i32_0 : i32, i32
  }
  func.func @transform_6(%arg0: i32) -> (i32, i32) {
    %c0_i32 = arith.constant 0 : i32
    %c0_i32_0 = arith.constant 0 : i32
    %c0_i32_1 = arith.constant 0 : i32
    return %c0_i32, %c0_i32_0 : i32, i32
  }
  func.func @transform_7(%arg0: i32) -> (i32, i32) {
    %c0_i32 = arith.constant 0 : i32
    %c0_i32_0 = arith.constant 0 : i32
    return %arg0, %c0_i32 : i32, i32
  }
}

</mosaic_0001>

<llo_original>
// kernel: projection_head.1
$region0: #{projection_head.1}
  #allocation0 [shape = 'u32[]', space=smem, size = 0x4, offset = 0x4, fixed_abs, tag = 'smem constant byte address 0x4 - core index']
  #allocation1 [shape = 'u32[144,128]{1,0:T(1,128)}', space=vmem, size = 0x12000, scoped, tag = 'internal scratch']
  %s0 = inlined_call_operand.vmem [shape: f32[8,32], index: 0, kind: input, shape index: {}]
  %s1 = inlined_call_operand.vmem [shape: bf16[32,128], index: 1, kind: input, shape index: {}]
  %s2 = inlined_call_operand.vmem [shape: f32[1,128], index: 2, kind: input, shape index: {}]
  %s3 = inlined_call_operand.vmem [shape: bf16[128,128], index: 3, kind: input, shape index: {}]
  %s4 = inlined_call_operand.vmem [shape: f32[1,128], index: 4, kind: input, shape index: {}]
  %s5 = inlined_call_operand.vmem [shape: f32[1,128], index: 5, kind: input, shape index: {}]
  %s6 = inlined_call_operand.vmem [shape: f32[1,128], index: 6, kind: input, shape index: {}]
  %s7 = inlined_call_operand.hbm [shape: f32[8,128], index: 7, kind: output, shape index: {}]
  %s8 = sld [smem:[#allocation0]]
  $region38: #{projection_head.1} parent=0
    _
  %s10 = ssub.s32 1, %s8
  %s11 = scalar_select 0, %s10, %s8
  $region1: #{projection_head.1} parent=0
    #allocation2 [shape = 'u8[4096]{0}', space=vmem, size = 0x1000, scoped, tag = 'output window, operand 0, single buffered']
    #allocation3 [shape = 's32[1]{0}', space=sflag, size = 0x4, scoped, tag = 'scoped memory for projection_head.1']
    %12 = vsyncpa [#allocation3], 0
    // Predicated region
    $region2: #{projection_head.1} parent=1 // pred_check
      _
    $region3: #{projection_head.1} parent=1 // pred_check_branch
      %14 = sbr.rel (0) target = $region5
    $region4: #{projection_head.1} parent=1 // pred_region
      _
    $region5: #{projection_head.1} parent=1 // pred_fallthru
      _
    // Predicated region
    $region6: #{projection_head.1} parent=1 // pred_check
      _
    $region7: #{projection_head.1} parent=1 // pred_check_branch
      %16 = sbr.rel (0) target = $region9
    $region8: #{projection_head.1} parent=1 // pred_region
      _
    $region9: #{projection_head.1} parent=1 // pred_fallthru
      _
    // Predicated region
    $region10: #{projection_head.1} parent=1 // pred_check
      _
    $region11: #{projection_head.1} parent=1 // pred_check_branch
      %18 = sbr.rel (0) target = $region13
    $region12: #{projection_head.1} parent=1 // pred_region
      _
    $region13: #{projection_head.1} parent=1 // pred_fallthru
      _
    // Predicated region
    $region14: #{projection_head.1} parent=1 // pred_check
      _
    $region15: #{projection_head.1} parent=1 // pred_check_branch
      %20 = sbr.rel (0) target = $region17
    $region16: #{projection_head.1} parent=1 // pred_region
      _
    $region17: #{projection_head.1} parent=1 // pred_fallthru
      _
    // Predicated region
    $region18: #{projection_head.1} parent=1 // pred_check
      _
    $region19: #{projection_head.1} parent=1 // pred_check_branch
      %22 = sbr.rel (0) target = $region21
    $region20: #{projection_head.1} parent=1 // pred_region
      _
    $region21: #{projection_head.1} parent=1 // pred_fallthru
      _
    // Predicated region
    $region22: #{projection_head.1} parent=1 // pred_check
      _
    $region23: #{projection_head.1} parent=1 // pred_check_branch
      %24 = sbr.rel (0) target = $region25
    $region24: #{projection_head.1} parent=1 // pred_region
      _
    $region25: #{projection_head.1} parent=1 // pred_fallthru
      _
    // Predicated region
    $region26: #{projection_head.1} parent=1 // pred_check
      _
    $region27: #{projection_head.1} parent=1 // pred_check_branch
      %26 = sbr.rel (0) target = $region29
    $region28: #{projection_head.1} parent=1 // pred_region
      _
    $region29: #{projection_head.1} parent=1 // pred_fallthru
      _
    %v28 = vld [vmem:[%s0] sm:$0xff]
    %v29 = vpack.c.bf16 %v28, %v28
    %v30 = vld [vmem:[%s1] sm:$0xf]
    %v31 = vld [vmem:[%s1 + $0x4] sm:$0xf]
    %v32 = vld [vmem:[%s1 + $0x8] sm:$0xf]
    %v33 = vld [vmem:[%s1 + $0xc] sm:$0xf]
    %v34 = vld [vmem:[%s2] sm:$0x1]
    %v36 = vlaneseq
    %v37 = vshrl.u32 %v36, 7
    %v38 = vsub.s32 0, %v37
    %v39 = vrot.slane %v34, %v38
    %v45 = vunpack.c.l.b16 %v30
    %v46 = vunpack.c.l.b16 %v31
    %v47 = vunpack.c.l.b16 %v32
    %v48 = vunpack.c.l.b16 %v33
    %v49 = vpack.c.b16 %v46, %v45
    %v50 = vpack.c.b16 %v48, %v47
    %vm53 = vcmask 261120
    %v55 = vsel %vm53, %v29, 0
    %57 = vmatprep.subr.bf16.mxu0 0
    %58 = vmatpush1.bf16.msra.mxu0 %v49
    %59 = vmatprep.subr.bf16.mxu0 0
    %60 = vmatpush1.bf16.msra.mxu0 %v50
    %61 = vmatprep.subr.bf16.mxu0 0
    %62 = vmatpush1.bf16.msra.mxu0 0
    %63 = vmatprep.subr.bf16.mxu0 0
    %64 = vmatpush1.bf16.msra.mxu0 0
    %65 = vmatprep.subr.bf16.mxu0 0
    %66 = vmatpush1.bf16.msra.mxu0 0
    %67 = vmatprep.subr.bf16.mxu0 0
    %68 = vmatpush1.bf16.msra.mxu0 0
    %69 = vmatprep.subr.bf16.mxu0 0
    %70 = vmatpush1.bf16.msra.mxu0 0
    %71 = vmatprep.subr.bf16.mxu0 0
    %72 = vmatpush1.bf16.msra.mxu0 0
    %73 = vmatprep.subr.bf16.mxu0 0
    %74 = vmatpush1.bf16.msra.mxu0 0
    %75 = vmatprep.subr.bf16.mxu0 0
    %76 = vmatpush1.bf16.msra.mxu0 0
    %77 = vmatprep.subr.bf16.mxu0 0
    %78 = vmatpush1.bf16.msra.mxu0 0
    %79 = vmatprep.subr.bf16.mxu0 0
    %80 = vmatpush1.bf16.msra.mxu0 0
    %81 = vmatprep.subr.bf16.mxu0 0
    %82 = vmatpush1.bf16.msra.mxu0 0
    %83 = vmatprep.subr.bf16.mxu0 0
    %84 = vmatpush1.bf16.msra.mxu0 0
    %85 = vmatprep.subr.bf16.mxu0 0
    %86 = vmatpush1.bf16.msra.mxu0 0
    %87 = vmatprep.subr.bf16.mxu0 0
    %88 = vmatpush1.bf16.msra.mxu0 0
    %89 = vmatprep.mubr.bf16.mxu0 0
    %90 = vmatmul.mubr.bf16.gmra.mrb[0].mxu0 %v55
    %v91 = vpop.f32.mrb[0].mxu0
    %v92 = vadd.f32 %v39, %v91
    %v93 = vpop.f32.mrb[0].mxu0
    %v94 = vpop.f32.mrb[0].mxu0
    %v95 = vpop.f32.mrb[0].mxu0
    %96 = vdwg.mxu0
    %v97 = vmul.f32 %v92, 0.5
    %v98 = vmul.f32 %v92, 0.70710677
    %v99 = verf.f32.pop %v98
    %v100 = vadd.f32 %v99, 1.0
    %v101 = vmul.f32 %v97, %v100
    %v102 = vpack.c.bf16 %v101, %v101
    %v103 = vld [vmem:[%s3] sm:$0xf]
    %v104 = vld [vmem:[%s3 + $0x4] sm:$0xf]
    %v105 = vld [vmem:[%s3 + $0x8] sm:$0xf]
    %v106 = vld [vmem:[%s3 + $0xc] sm:$0xf]
    %v107 = vld [vmem:[%s3 + $0x10] sm:$0xf]
    %v108 = vld [vmem:[%s3 + $0x14] sm:$0xf]
    %v109 = vld [vmem:[%s3 + $0x18] sm:$0xf]
    %v110 = vld [vmem:[%s3 + $0x1c] sm:$0xf]
    %v111 = vld [vmem:[%s3 + $0x20] sm:$0xf]
    %v112 = vld [vmem:[%s3 + $0x24] sm:$0xf]
    %v113 = vld [vmem:[%s3 + $0x28] sm:$0xf]
    %v114 = vld [vmem:[%s3 + $0x2c] sm:$0xf]
    %v115 = vld [vmem:[%s3 + $0x30] sm:$0xf]
    %v116 = vld [vmem:[%s3 + $0x34] sm:$0xf]
    %v117 = vld [vmem:[%s3 + $0x38] sm:$0xf]
    %v118 = vld [vmem:[%s3 + $0x3c] sm:$0xf]
    %v119 = vld [vmem:[%s4] sm:$0x1]
    %v121 = vlaneseq
    %v122 = vshrl.u32 %v121, 7
    %v123 = vsub.s32 0, %v122
    %v124 = vrot.slane %v119, %v123
    %v142 = vunpack.c.l.b16 %v103
    %v143 = vunpack.c.l.b16 %v104
    %v144 = vunpack.c.l.b16 %v105
    %v145 = vunpack.c.l.b16 %v106
    %v146 = vunpack.c.l.b16 %v107
    %v147 = vunpack.c.l.b16 %v108
    %v148 = vunpack.c.l.b16 %v109
    %v149 = vunpack.c.l.b16 %v110
    %v150 = vunpack.c.l.b16 %v111
    %v151 = vunpack.c.l.b16 %v112
    %v152 = vunpack.c.l.b16 %v113
    %v153 = vunpack.c.l.b16 %v114
    %v154 = vunpack.c.l.b16 %v115
    %v155 = vunpack.c.l.b16 %v116
    %v156 = vunpack.c.l.b16 %v117
    %v157 = vunpack.c.l.b16 %v118
    %v158 = vpack.c.b16 %v143, %v142
    %v159 = vpack.c.b16 %v145, %v144
    %v160 = vpack.c.b16 %v147, %v146
    %v161 = vpack.c.b16 %v149, %v148
    %v162 = vpack.c.b16 %v151, %v150
    %v163 = vpack.c.b16 %v153, %v152
    %v164 = vpack.c.b16 %v155, %v154
    %v165 = vpack.c.b16 %v157, %v156
    %174 = vmatprep.subr.bf16.mxu0 0
    %175 = vmatpush1.bf16.msra.mxu0 %v158
    %176 = vmatprep.subr.bf16.mxu0 0
    %177 = vmatpush1.bf16.msra.mxu0 %v159
    %178 = vmatprep.subr.bf16.mxu0 0
    %179 = vmatpush1.bf16.msra.mxu0 %v160
    %180 = vmatprep.subr.bf16.mxu0 0
    %181 = vmatpush1.bf16.msra.mxu0 %v161
    %182 = vmatprep.subr.bf16.mxu0 0
    %183 = vmatpush1.bf16.msra.mxu0 %v162
    %184 = vmatprep.subr.bf16.mxu0 0
    %185 = vmatpush1.bf16.msra.mxu0 %v163
    %186 = vmatprep.subr.bf16.mxu0 0
    %187 = vmatpush1.bf16.msra.mxu0 %v164
    %188 = vmatprep.subr.bf16.mxu0 0
    %189 = vmatpush1.bf16.msra.mxu0 %v165
    %190 = vmatprep.subr.bf16.mxu0 0
    %191 = vmatpush1.bf16.msra.mxu0 0
    %192 = vmatprep.subr.bf16.mxu0 0
    %193 = vmatpush1.bf16.msra.mxu0 0
    %194 = vmatprep.subr.bf16.mxu0 0
    %195 = vmatpush1.bf16.msra.mxu0 0
    %196 = vmatprep.subr.bf16.mxu0 0
    %197 = vmatpush1.bf16.msra.mxu0 0
    %198 = vmatprep.subr.bf16.mxu0 0
    %199 = vmatpush1.bf16.msra.mxu0 0
    %200 = vmatprep.subr.bf16.mxu0 0
    %201 = vmatpush1.bf16.msra.mxu0 0
    %202 = vmatprep.subr.bf16.mxu0 0
    %203 = vmatpush1.bf16.msra.mxu0 0
    %204 = vmatprep.subr.bf16.mxu0 0
    %205 = vmatpush1.bf16.msra.mxu0 0
    %206 = vmatprep.mubr.bf16.mxu0 0
    %207 = vmatmul.mubr.bf16.gmra.mrb[0].mxu0 %v102
    %v208 = vpop.f32.mrb[0].mxu0
    %v209 = vadd.f32 %v124, %v208
    %v210 = vpop.f32.mrb[0].mxu0
    %v211 = vpop.f32.mrb[0].mxu0
    %v212 = vpop.f32.mrb[0].mxu0
    %213 = vdwg.mxu0
    %v214 = vadd.f32 %v209, %v92
    %215 = vadd.xlane.f32.xlu0 %v214
    %v216 = vpop.xlane.xlu0 %215
    %v217 = vmul.f32 %v214, %v214
    %218 = vadd.xlane.f32.xlu0 %v217
    %v219 = vpop.xlane.xlu0 %218
    %v220 = vmul.f32 %v216, 0.0078125
    %v221 = vmul.f32 %v219, 0.0078125
    %v222 = vmul.f32 %v220, %v220
    %v223 = vsub.f32 %v221, %v222
    %v224 = vadd.f32 %v223, 1e-05
    %v225 = vrsqrt.pop %v224
    %v226 = vsub.f32 %v214, %v220
    %v227 = vmul.f32 %v226, %v225
    %v228 = vld [vmem:[%s5] sm:$0x1]
    %v230 = vlaneseq
    %v231 = vshrl.u32 %v230, 7
    %v232 = vsub.s32 0, %v231
    %v233 = vrot.slane %v228, %v232
    %v235 = vmul.f32 %v227, %v233
    %v236 = vld [vmem:[%s6] sm:$0x1]
    %v238 = vlaneseq
    %v239 = vshrl.u32 %v238, 7
    %v240 = vsub.s32 0, %v239
    %v241 = vrot.slane %v236, %v240
    %v243 = vadd.f32 %v235, %v241
    %244 = vst [vmem:[#allocation2] sm:$0xff] %v243
    // Predicated region
    $region30: #{projection_head.1} parent=1 // pred_check
      _
    $region31: #{projection_head.1} parent=1 // pred_check_branch
      %246 = sbr.rel (0) target = $region33
    $region32: #{projection_head.1} parent=1 // pred_region
      %s248 = ssub.s32 128, 128
      %249 = vsyncadd [#allocation3], %s248
      %s251 = sshll.u32 [#allocation2], 4
      %s252 = int_to_ptr.vmem [resolvable:$true] %s251
      %254 = dma.vmem_to_hbm [thread:$0]  %s252, 128, %s7, [#allocation3]
    $region33: #{projection_head.1} parent=1 // pred_fallthru
      _
    // Predicated region
    $region34: #{projection_head.1} parent=1 // pred_check
      _
    $region35: #{projection_head.1} parent=1 // pred_check_branch
      %256 = sbr.rel (0) target = $region37
    $region36: #{projection_head.1} parent=1 // pred_region
      %257 = dma.done [#allocation3], 128
    $region37: #{projection_head.1} parent=1 // pred_fallthru
      _
    %258 = vsyncpa [#allocation3], 1

</llo_original>
